<compile_context>
chip_gen: v5e
topology: v5e:2x2
jax: 0.10.0
libtpu: 0.0.40
codegen_flags: <defaults>
</compile_context>

<pallas_src>
import jax
import jax.numpy as jnp
from jax.experimental import pallas as pl
from jax.experimental.pallas import tpu as pltpu


def _pooler_kernel(x_ref, w_ref, b_ref, o_ref, y_acc, sq_acc):
    # x_ref : (TB, H)   first-token activations (native dtype)
    # w_ref : (H, TN)   pre-transposed weight slice (native dtype)
    # b_ref : (1, TN)   bias slice
    # o_ref : (TB, H)   output block, VMEM-resident across the N axis
    # y_acc : (TB, H)   f32 scratch holding the un-normalized rows
    # sq_acc: (TB, 1)   f32 running sum of squares
    n = pl.program_id(1)
    n_last = pl.num_programs(1) - 1
    tn = w_ref.shape[1]

    @pl.when(n == 0)
    def _():
        sq_acc[...] = jnp.zeros_like(sq_acc)

    # MXU matmul: native-dtype operands, f32 accumulation.
    y = jnp.dot(x_ref[...], w_ref[...], preferred_element_type=jnp.float32)
    y = y + b_ref[...].astype(jnp.float32)

    if tn == y_acc.shape[1]:
        # Single N tile: static full-width store.
        y_acc[...] = y
    else:
        # TN always divides H and is a multiple of 128 -> lane-aligned slice.
        col = pl.multiple_of(n * tn, tn)
        y_acc[:, pl.ds(col, tn)] = y

    sq_acc[...] += jnp.sum(y * y, axis=-1, keepdims=True)

    @pl.when(n == n_last)
    def _():
        # F.normalize(eps=1e-12): clamp ||y|| at 1e-12  <=>  clamp ||y||^2 at 1e-24.
        inv = jax.lax.rsqrt(jnp.maximum(sq_acc[...], 1e-24))
        o_ref[...] = (y_acc[...] * inv).astype(o_ref.dtype)


def _pick_n_tile(H, itemsize, budget_bytes=4 * 1024 * 1024):
    """Output-dim tile for the weight: full H if small, else a 128-multiple
    divisor of H keeping the per-step weight block under ~4 MiB."""
    if H * H * itemsize <= budget_bytes:
        return H
    for tn in (1024, 512, 256, 128):
        if H % tn == 0 and H * tn * itemsize <= budget_bytes:
            return tn
    return H


def prepare_pooler_params(weight, bias):
    """One-time prep, OUTSIDE the hot path: torch nn.Linear stores weight as
    (out, in); the kernel wants (in, out) so x @ W needs no per-call transpose."""
    return weight.T, bias.reshape(1, -1)


def bert_pooler_l2norm(hidden_states, w_t, bias2d):
    """hidden_states: (B, S, H); w_t: (H_in, H_out) pre-transposed; bias2d: (1, H)."""
    B, S, H = hidden_states.shape

    # Densify the first-token gather in the wrapper so the kernel's activation
    # DMA is lane/sublane-dense (and the slice can fuse with its producer).
    first = hidden_states[:, 0, :]                          # (B, H)

    tb = B if B <= 256 else 256
    tn = _pick_n_tile(H, jnp.dtype(w_t.dtype).itemsize)
    grid = (pl.cdiv(B, tb), pl.cdiv(H, tn))

    def isz(a):
        return jnp.dtype(a.dtype).itemsize

    cost = pl.CostEstimate(
        flops=2 * B * H * H,
        transcendentals=B,
        bytes_accessed=(H * H * isz(w_t)
                        + B * H * (isz(first) + isz(hidden_states))
                        + H * isz(bias2d)),
    )

    return pl.pallas_call(
        _pooler_kernel,
        out_shape=jax.ShapeDtypeStruct((B, H), hidden_states.dtype),
        grid_spec=pltpu.PrefetchScalarGridSpec(
            num_scalar_prefetch=0,
            grid=grid,
            in_specs=[
                pl.BlockSpec((tb, H), lambda b, n: (b, 0)),   # activations
                pl.BlockSpec((H, tn), lambda b, n: (0, n)),   # weight (in, out)
                pl.BlockSpec((1, tn), lambda b, n: (0, n)),   # bias
            ],
            out_specs=pl.BlockSpec((tb, H), lambda b, n: (b, 0)),
            scratch_shapes=[
                pltpu.VMEM((tb, H), jnp.float32),   # y accumulator
                pltpu.VMEM((tb, 1), jnp.float32),   # sum-of-squares accumulator
            ],
        ),
        compiler_params=pltpu.CompilerParams(
            dimension_semantics=("parallel", "arbitrary"),
        ),
        cost_estimate=cost,
    )(first, w_t, bias2d)


if __name__ == "__main__":
    # Small, deterministic config: batch=2, seq=8, hidden=32
    B, S, H = 2, 8, 32
    key = jax.random.PRNGKey(0)
    k_x, k_w, k_b = jax.random.split(key, 3)

    hidden_states = jax.random.normal(k_x, (B, S, H), dtype=jnp.float32)
    # nn.Linear(H, H): weight (H_out, H_in), bias (H,)
    weight = jax.random.normal(k_w, (H, H), dtype=jnp.float32) * 0.02
    bias = jax.random.normal(k_b, (H,), dtype=jnp.float32) * 0.02

    # One-time parameter prep (kept outside the per-call hot path).
    w_t, b2 = prepare_pooler_params(weight, bias)

    out = bert_pooler_l2norm(hidden_states, w_t, b2)
    out = jax.block_until_ready(out)

    # Reference in plain JAX for sanity
    first = hidden_states[:, 0]
    ref = first @ weight.T + bias
    ref = ref / jnp.maximum(
        jnp.sqrt(jnp.sum(ref * ref, axis=-1, keepdims=True)), 1e-12
    )
    assert out.shape == (B, H)
    assert jnp.allclose(out, ref, atol=1e-5, rtol=1e-5)

    print("KERNEL_OK")
</pallas_src>

<mosaic_0001>
module attributes {stable_mosaic.version = 11 : i64} {
  func.func @_pooler_kernel(%arg0: i32, %arg1: i32, %arg2: memref<2x32xf32, #tpu.memory_space<vmem>>, %arg3: memref<32x32xf32, #tpu.memory_space<vmem>>, %arg4: memref<1x32xf32, #tpu.memory_space<vmem>>, %arg5: memref<2x32xf32, #tpu.memory_space<vmem>>, %arg6: memref<2x32xf32, #tpu.memory_space<vmem>>, %arg7: memref<2x1xf32, #tpu.memory_space<vmem>>) attributes {dimension_semantics = [#tpu.dimension_semantics<parallel>, #tpu.dimension_semantics<arbitrary>], iteration_bounds = array<i64: 1, 1>, scalar_prefetch = 0 : i64, scratch_operands = 2 : i64, tpu.core_type = #tpu.core_type<tc>, window_params = [{transform_indices = @transform_0, window_bounds = array<i64: 2, 32>}, {transform_indices = @transform_1, window_bounds = array<i64: 32, 32>}, {transform_indices = @transform_2, window_bounds = array<i64: 1, 32>}, {transform_indices = @transform_3, window_bounds = array<i64: 2, 32>}]} {
    %c0_i32 = arith.constant 0 : i32
    %0 = arith.cmpi eq, %arg1, %c0_i32 : i32
    %1 = arith.extui %0 : i1 to i32
    %c0_i32_0 = arith.constant 0 : i32
    %2 = arith.cmpi ne, %1, %c0_i32_0 : i32
    scf.if %2 {
      %cst_15 = arith.constant 0.000000e+00 : f32
      %19 = vector.broadcast %cst_15 : f32 to vector<2x1xf32>
      %c0_16 = arith.constant 0 : index
      %c0_17 = arith.constant 0 : index
      %20 = vector.load %arg7[%c0_16, %c0_17] : memref<2x1xf32, #tpu.memory_space<vmem>>, vector<2x1xf32>
      tpu.vector_store %arg7[%c0_16, %c0_17], %19 {strides = array<i32>} : memref<2x1xf32, #tpu.memory_space<vmem>>, vector<2x1xf32>,
    } else {
    }
    %c0 = arith.constant 0 : index
    %c0_1 = arith.constant 0 : index
    %3 = vector.load %arg2[%c0, %c0_1] : memref<2x32xf32, #tpu.memory_space<vmem>>, vector<2x32xf32>
    %c0_2 = arith.constant 0 : index
    %c0_3 = arith.constant 0 : index
    %4 = vector.load %arg3[%c0_2, %c0_3] : memref<32x32xf32, #tpu.memory_space<vmem>>, vector<32x32xf32>
    %cst = arith.constant dense<0.000000e+00> : vector<2x32xf32>
    %5 = tpu.matmul %3, %4, %cst {dimension_numbers = #tpu.dot_dimension_numbers<[1], [0], [0], [1], [0, 0, 1, 1], [], []>} : vector<2x32xf32>, vector<32x32xf32>, vector<2x32xf32> -> vector<2x32xf32>
    %c0_4 = arith.constant 0 : index
    %c0_5 = arith.constant 0 : index
    %6 = vector.load %arg4[%c0_4, %c0_5] : memref<1x32xf32, #tpu.memory_space<vmem>>, vector<1x32xf32>
    %7 = vector.broadcast %6 : vector<1x32xf32> to vector<2x32xf32>
    %8 = arith.addf %5, %7 : vector<2x32xf32>
    %c0_6 = arith.constant 0 : index
    %c0_7 = arith.constant 0 : index
    %9 = vector.load %arg6[%c0_6, %c0_7] : memref<2x32xf32, #tpu.memory_space<vmem>>, vector<2x32xf32>
    tpu.vector_store %arg6[%c0_6, %c0_7], %8 {strides = array<i32>} : memref<2x32xf32, #tpu.memory_space<vmem>>, vector<2x32xf32>,
    %c0_8 = arith.constant 0 : index
    %c0_9 = arith.constant 0 : index
    %10 = vector.load %arg7[%c0_8, %c0_9] : memref<2x1xf32, #tpu.memory_space<vmem>>, vector<2x1xf32>
    %11 = arith.mulf %8, %8 : vector<2x32xf32>
    %cst_10 = arith.constant dense<0.000000e+00> : vector<2xf32>
    %12 = vector.multi_reduction <add>, %11, %cst_10 [1] : vector<2x32xf32> to vector<2xf32>
    %13 = vector.shape_cast %12 : vector<2xf32> to vector<2x1xf32>
    %14 = arith.addf %10, %13 : vector<2x1xf32>
    %c0_11 = arith.constant 0 : index
    %c0_12 = arith.constant 0 : index
    %15 = vector.load %arg7[%c0_11, %c0_12] : memref<2x1xf32, #tpu.memory_space<vmem>>, vector<2x1xf32>
    tpu.vector_store %arg7[%c0_11, %c0_12], %14 {strides = array<i32>} : memref<2x1xf32, #tpu.memory_space<vmem>>, vector<2x1xf32>,
    %c0_i32_13 = arith.constant 0 : i32
    %16 = arith.cmpi eq, %arg1, %c0_i32_13 : i32
    %17 = arith.extui %16 : i1 to i32
    %c0_i32_14 = arith.constant 0 : i32
    %18 = arith.cmpi ne, %17, %c0_i32_14 : i32
    scf.if %18 {
      %c0_15 = arith.constant 0 : index
      %c0_16 = arith.constant 0 : index
      %19 = vector.load %arg7[%c0_15, %c0_16] : memref<2x1xf32, #tpu.memory_space<vmem>>, vector<2x1xf32>
      %cst_17 = arith.constant 1.000000e-24 : f32
      %20 = vector.broadcast %cst_17 : f32 to vector<2x1xf32>
      %21 = arith.maximumf %19, %20 : vector<2x1xf32>
      %22 = math.rsqrt %21 : vector<2x1xf32>
      %c0_18 = arith.constant 0 : index
      %c0_19 = arith.constant 0 : index
      %23 = vector.load %arg6[%c0_18, %c0_19] : memref<2x32xf32, #tpu.memory_space<vmem>>, vector<2x32xf32>
      %24 = vector.broadcast %22 : vector<2x1xf32> to vector<2x32xf32>
      %25 = arith.mulf %23, %24 : vector<2x32xf32>
      %c0_20 = arith.constant 0 : index
      %c0_21 = arith.constant 0 : index
      %26 = vector.load %arg5[%c0_20, %c0_21] : memref<2x32xf32, #tpu.memory_space<vmem>>, vector<2x32xf32>
      tpu.vector_store %arg5[%c0_20, %c0_21], %25 {strides = array<i32>} : memref<2x32xf32, #tpu.memory_space<vmem>>, vector<2x32xf32>,
    } else {
    }
    return
  }
  func.func @transform_0(%arg0: i32, %arg1: i32) -> (i32, i32) {
    %c0_i32 = arith.constant 0 : i32
    %c0_i32_0 = arith.constant 0 : i32
    return %arg0, %c0_i32 : i32, i32
  }
  func.func @transform_1(%arg0: i32, %arg1: i32) -> (i32, i32) {
    %c0_i32 = arith.constant 0 : i32
    %c0_i32_0 = arith.constant 0 : i32
    return %c0_i32, %arg1 : i32, i32
  }
  func.func @transform_2(%arg0: i32, %arg1: i32) -> (i32, i32) {
    %c0_i32 = arith.constant 0 : i32
    %c0_i32_0 = arith.constant 0 : i32
    return %c0_i32, %arg1 : i32, i32
  }
  func.func @transform_3(%arg0: i32, %arg1: i32) -> (i32, i32) {
    %c0_i32 = arith.constant 0 : i32
    %c0_i32_0 = arith.constant 0 : i32
    return %arg0, %c0_i32 : i32, i32
  }
}

</mosaic_0001>

<llo_original>
// kernel: tpu_custom_call.1
$region0: #{tpu_custom_call.1}
  #allocation0 [shape = 'u32[]', space=smem, size = 0x4, offset = 0x4, fixed_abs, tag = 'smem constant byte address 0x4 - core index']
  #allocation1 [shape = 'u32[72,128]{1,0:T(1,128)}', space=vmem, size = 0x9000, scoped, tag = 'internal scratch']
  #allocation2 [shape = 'f32[2,32]{1,0:T(2,128)}', space=vmem, size = 0x400, scoped, tag = 'scratch operand']
  #allocation3 [shape = 'f32[2,1]{1,0:T(2,128)}', space=vmem, size = 0x400, scoped, tag = 'scratch operand']
  %s0 = inlined_call_operand.hbm [shape: f32[2,32], index: 0, kind: input, shape index: {}]
  %s1 = inlined_call_operand.hbm [shape: f32[32,32], index: 1, kind: input, shape index: {}]
  %s2 = inlined_call_operand.vmem [shape: f32[1,32], index: 2, kind: input, shape index: {}]
  %s3 = inlined_call_operand.hbm [shape: f32[2,32], index: 3, kind: output, shape index: {}]
  %s4 = sld [smem:[#allocation0]]
  $region38: #{tpu_custom_call.1} parent=0
    _
  %s6 = ssub.s32 1, %s4
  %s7 = scalar_select 0, %s6, %s4
  $region1: #{tpu_custom_call.1} parent=0
    #allocation4 [shape = 'u8[1024]{0}', space=vmem, size = 0x400, scoped, tag = 'input window, operand 0, single buffered']
    #allocation5 [shape = 's32[1]{0}', space=sflag, size = 0x4, scoped, tag = 'scoped memory for tpu_custom_call.1']
    #allocation6 [shape = 's32[1]{0}', space=sflag, size = 0x4, scoped, tag = 'scoped memory for tpu_custom_call.1']
    #allocation7 [shape = 'u8[16384]{0}', space=vmem, size = 0x4000, scoped, tag = 'input window, operand 1, single buffered']
    #allocation8 [shape = 's32[1]{0}', space=sflag, size = 0x4, scoped, tag = 'scoped memory for tpu_custom_call.1']
    #allocation9 [shape = 'u8[1024]{0}', space=vmem, size = 0x400, scoped, tag = 'output window, operand 0, single buffered']
    %8 = vsyncpa [#allocation5], 0
    %9 = vsyncpa [#allocation8], 0
    %10 = vsyncpa [#allocation6], 0
    // Predicated region
    $region2: #{tpu_custom_call.1} parent=1 // pred_check
      _
    $region3: #{tpu_custom_call.1} parent=1 // pred_check_branch
      %12 = sbr.rel (0) target = $region5
    $region4: #{tpu_custom_call.1} parent=1 // pred_region
      %14 = vsyncadd [#allocation5], 0
      %s16 = sshll.u32 %s0, 4
      %s17 = int_to_ptr.hbm [resolvable:$true] %s16
      %s18 = sshll.u32 [#allocation4], 4
      %s19 = int_to_ptr.vmem [resolvable:$true] %s18
      %21 = dma.hbm_to_vmem [thread:$0]  %s17, 32, %s19, [#allocation5]
    $region5: #{tpu_custom_call.1} parent=1 // pred_fallthru
      _
    // Predicated region
    $region6: #{tpu_custom_call.1} parent=1 // pred_check
      _
    $region7: #{tpu_custom_call.1} parent=1 // pred_check_branch
      %23 = sbr.rel (0) target = $region9
    $region8: #{tpu_custom_call.1} parent=1 // pred_region
      %25 = vsyncadd [#allocation8], 0
      %s26 = sshll.u32 %s1, 4
      %s27 = int_to_ptr.hbm [resolvable:$true] %s26
      %s28 = sshll.u32 [#allocation7], 4
      %s29 = int_to_ptr.vmem [resolvable:$true] %s28
      %34 = dma.hbm_to_vmem [thread:$0]  %s27, 512, %s29, [#allocation8], 128, 128, 8
    $region9: #{tpu_custom_call.1} parent=1 // pred_fallthru
      _
    // Predicated region
    $region10: #{tpu_custom_call.1} parent=1 // pred_check
      _
    $region11: #{tpu_custom_call.1} parent=1 // pred_check_branch
      %36 = sbr.rel (0) target = $region13
    $region12: #{tpu_custom_call.1} parent=1 // pred_region
      _
    $region13: #{tpu_custom_call.1} parent=1 // pred_fallthru
      _
    // Predicated region
    $region14: #{tpu_custom_call.1} parent=1 // pred_check
      _
    $region15: #{tpu_custom_call.1} parent=1 // pred_check_branch
      %38 = sbr.rel (0) target = $region17
    $region16: #{tpu_custom_call.1} parent=1 // pred_region
      %40 = dma.done [#allocation5], 32
    $region17: #{tpu_custom_call.1} parent=1 // pred_fallthru
      _
    // Predicated region
    $region18: #{tpu_custom_call.1} parent=1 // pred_check
      _
    $region19: #{tpu_custom_call.1} parent=1 // pred_check_branch
      %42 = sbr.rel (0) target = $region21
    $region20: #{tpu_custom_call.1} parent=1 // pred_region
      %44 = dma.done [#allocation8], 512
    $region21: #{tpu_custom_call.1} parent=1 // pred_fallthru
      _
    %p45 = scmp.eq.s32.totalorder 0, 0
    // Predicated region
    $region22: #{tpu_custom_call.1} parent=1 // pred_check
      %p46 = pneg %p45
    $region23: #{tpu_custom_call.1} parent=1 // pred_check_branch
      %48 = sbr.rel (%p46) target = $region25
    $region24: #{tpu_custom_call.1} parent=1 // pred_region
      %vm49 = vcmask 1024
      %50 = vst.msk [vmem:[#allocation3] sm:$0x3] %vm49, 0.0
    $region25: #{tpu_custom_call.1} parent=1 // pred_fallthru
      _
    %v51 = vld [vmem:[#allocation4] sm:$0x3]
    %v52 = vld [vmem:[#allocation7] sm:$0xff]
    %v53 = vld [vmem:[#allocation7 + $0x8] sm:$0xff]
    %v54 = vld [vmem:[#allocation7 + $0x10] sm:$0xff]
    %v55 = vld [vmem:[#allocation7 + $0x18] sm:$0xff]
    %v56 = vld [vmem:[%s2] sm:$0x1]
    %v58 = vperm.slane %v56, 0
    %vm60 = vcmask 261120
    %v62 = vsel %vm60, %v51, 0
    %64 = vmatpush.msra.mxu0 0.0
    %65 = vmatpush.msra.mxu0 0.0
    %66 = vmatpush.msra.mxu0 0.0
    %67 = vmatpush.msra.mxu0 0.0
    %68 = vmatpush.msra.mxu0 0.0
    %69 = vmatpush.msra.mxu0 0.0
    %70 = vmatpush.msra.mxu0 0.0
    %71 = vmatpush.msra.mxu0 0.0
    %72 = vmatpush.msra.mxu0 0.0
    %73 = vmatpush.msra.mxu0 0.0
    %74 = vmatpush.msra.mxu0 0.0
    %75 = vmatpush.msra.mxu0 0.0
    %76 = vmatpush.msra.mxu0 %v55
    %77 = vmatpush.msra.mxu0 %v54
    %78 = vmatpush.msra.mxu0 %v53
    %79 = vmatpush.msra.mxu0 %v52
    %80 = vmatmul.f32.gmra.mxu0 %v62
    %v81 = vpop.f32.mrf.mxu0
    %v82 = vadd.f32 %v58, %v81
    %83 = vdwg.mxu0
    %vm84 = vcmask 254976
    %85 = vst.msk [vmem:[#allocation2] sm:$0x3] %vm84, %v82
    %v86 = vld [vmem:[#allocation3] sm:$0x3]
    %v87 = vmul.f32 %v82, %v82
    %v88 = vsel %vm84, %v87, 0.0
    %89 = vadd.xlane.f32.xlu0 %v88
    %v90 = vpop.xlane.xlu0 %89
    %v91 = vadd.f32 %v86, %v90
    %vm92 = vcmask 1024
    %93 = vst.msk [vmem:[#allocation3] sm:$0x3] %vm92, %v91
    // Predicated region
    $region26: #{tpu_custom_call.1} parent=1 // pred_check
      %p94 = pneg %p45
    $region27: #{tpu_custom_call.1} parent=1 // pred_check_branch
      %96 = sbr.rel (%p94) target = $region29
    $region28: #{tpu_custom_call.1} parent=1 // pred_region
      %v97 = vld [vmem:[#allocation3] sm:$0x3]
      %v98 = vmax.f32 %v97, 1e-24
      %v99 = vrsqrt.pop %v98
      %v100 = vmul.f32 %v99, %v98
      %v101 = vmul.f32 %v100, %v99
      %v102 = vmul.f32 0.5, %v101
      %v103 = vsub.f32 1.5, %v102
      %v104 = vmul.f32 %v99, %v103
      %vm105 = vweird.f32 %v98
      %vm106 = vweird.f32 %v99
      %vm107 = vmor %vm105, %vm106
      %v108 = vsel %vm107, %v99, %v104
      %v109 = vld [vmem:[#allocation2] sm:$0x3]
      %111 = vset.pattern.permute.xlu0 0
      %112 = vperm.xlu0 %111, %v108
      %v113 = vpop.permute.xlu0 %112
      %v115 = vmul.f32 %v109, %v113
      %116 = vst.msk [vmem:[#allocation9] sm:$0x3] %vm84, %v115
    $region29: #{tpu_custom_call.1} parent=1 // pred_fallthru
      _
    // Predicated region
    $region30: #{tpu_custom_call.1} parent=1 // pred_check
      _
    $region31: #{tpu_custom_call.1} parent=1 // pred_check_branch
      %118 = sbr.rel (0) target = $region33
    $region32: #{tpu_custom_call.1} parent=1 // pred_region
      %120 = vsyncadd [#allocation6], 0
      %s122 = sshll.u32 [#allocation9], 4
      %s123 = int_to_ptr.vmem [resolvable:$true] %s122
      %s124 = sshll.u32 %s3, 4
      %s125 = int_to_ptr.hbm [resolvable:$true] %s124
      %127 = dma.vmem_to_hbm [thread:$0]  %s123, 32, %s125, [#allocation6]
    $region33: #{tpu_custom_call.1} parent=1 // pred_fallthru
      _
    // Predicated region
    $region34: #{tpu_custom_call.1} parent=1 // pred_check
      _
    $region35: #{tpu_custom_call.1} parent=1 // pred_check_branch
      %129 = sbr.rel (0) target = $region37
    $region36: #{tpu_custom_call.1} parent=1 // pred_region
      %131 = dma.done [#allocation6], 32
    $region37: #{tpu_custom_call.1} parent=1 // pred_fallthru
      _
    %132 = vsyncpa [#allocation5], 1
    %133 = vsyncpa [#allocation8], 1
    %134 = vsyncpa [#allocation6], 1

</llo_original>
